<compile_context>
chip_gen: v6e
topology: v6e:2x2x1
jax: 0.10.0
libtpu: 0.0.40
codegen_flags: <defaults>
</compile_context>

<pallas_src>
import math

import jax
import jax.numpy as jnp
from jax.experimental import pallas as pl
from jax.experimental.pallas import tpu as pltpu

IN_DIM = 4
HIDDEN = 128
OUT_DIM = 2
LANE = 128


def policy_kernel(xT_ref, w1T_ref, b1_ref, w2T_ref, b2_ref, w3T_ref, b3_ref, out_ref):
    # Transposed layout: (hidden, batch) tiles; batch rides the 128-lane axis.
    xT = xT_ref[...]                                   # (4, TILE_B)   f32
    w1T = w1T_ref[...]                                 # (128, 4)      f32

    # Layer 1 (K=4): four rank-1 outer products on the VPU.
    h1 = (w1T[:, 0:1] * xT[0:1, :]
          + w1T[:, 1:2] * xT[1:2, :]
          + w1T[:, 2:3] * xT[2:3, :]
          + w1T[:, 3:4] * xT[3:4, :]
          + b1_ref[...])                               # (128, TILE_B)
    h1 = jnp.maximum(h1, 0.0)

    # Layer 2: bf16 MXU matmul, f32 accumulate; bias/ReLU in f32.
    h2 = jnp.dot(w2T_ref[...], h1.astype(jnp.bfloat16),
                 preferred_element_type=jnp.float32) + b2_ref[...]
    h2 = jnp.maximum(h2, 0.0)                          # (128, TILE_B)

    # Layer 3 (head): (2,128) @ (128,TILE_B) -> (2, TILE_B); no lane padding.
    h3 = jnp.dot(w3T_ref[...], h2.astype(jnp.bfloat16),
                 preferred_element_type=jnp.float32) + b3_ref[...]

    # softplus only on the std row (row 1); row 0 stays the raw mean.
    row = jax.lax.broadcasted_iota(jnp.int32, h3.shape, 0)
    out_ref[...] = jnp.where(row == 1, jnp.logaddexp(h3, 0.0), h3)


def prepare_params(params):
    """One-time parameter prep (transpose + bf16 cast of the MXU weights).

    Hoisted out of the per-forward path; call once per parameter set."""
    w1, b1, w2, b2, w3, b3 = params
    return (
        jnp.asarray(w1, jnp.float32).T,                        # (128, 4)
        jnp.asarray(b1, jnp.float32).reshape(HIDDEN, 1),       # (128, 1)
        jnp.asarray(w2, jnp.float32).T.astype(jnp.bfloat16),   # (128, 128)
        jnp.asarray(b2, jnp.float32).reshape(HIDDEN, 1),       # (128, 1)
        jnp.asarray(w3, jnp.float32).T.astype(jnp.bfloat16),   # (2, 128)
        jnp.asarray(b3, jnp.float32).reshape(OUT_DIM, 1),      # (2, 1)
    )


def _pick_tiling(B):
    """Static batch tiling: big tiles amortize the ~0.35us per-grid-step
    overhead, but keep >=2 grid steps when possible so the 'parallel' batch
    axis can shard across both TensorCores on v7x."""
    Bp = -(-B // LANE) * LANE
    tile = LANE
    for cand in (256, 512, 1024):
        if Bp % cand == 0 and Bp // cand >= 2:
            tile = cand
    return Bp, tile


@jax.jit
def policy_net_forward(x, prep):
    """x: (B, 4) or (4,) float32 state(s). Returns (mean, std): (B,) each or scalars."""
    w1T, b1, w2T, b2, w3T, b3 = prep
    x = jnp.asarray(x, jnp.float32)
    squeeze = x.ndim == 1
    if squeeze:
        x = x[None, :]
    B = x.shape[0]
    Bp, tile_b = _pick_tiling(B)

    xT = jnp.pad(x.T, ((0, 0), (0, Bp - B)))   # lane-dense (4, Bp); pad rows discarded

    const = lambda i: (0, 0)   # weights: same block every step -> VMEM-resident
    out = pl.pallas_call(
        policy_kernel,
        out_shape=jax.ShapeDtypeStruct((OUT_DIM, Bp), jnp.float32),
        grid=(Bp // tile_b,),
        in_specs=[
            pl.BlockSpec((IN_DIM, tile_b), lambda i: (0, i)),   # x^T tile
            pl.BlockSpec((HIDDEN, IN_DIM), const),              # w1^T (f32)
            pl.BlockSpec((HIDDEN, 1), const),                   # b1
            pl.BlockSpec((HIDDEN, HIDDEN), const),              # w2^T (bf16)
            pl.BlockSpec((HIDDEN, 1), const),                   # b2
            pl.BlockSpec((OUT_DIM, HIDDEN), const),             # w3^T (bf16)
            pl.BlockSpec((OUT_DIM, 1), const),                  # b3
        ],
        out_specs=pl.BlockSpec((OUT_DIM, tile_b), lambda i: (0, i)),
        compiler_params=pltpu.CompilerParams(
            dimension_semantics=("parallel",)),
    )(xT, w1T, b1, w2T, b2, w3T, b3)

    mean = out[0, :B]
    std = out[1, :B]
    if squeeze:
        return mean[0], std[0]
    return mean, std


def init_params(key):
    """Deterministic init matching nn.Linear's default U(-1/sqrt(in), 1/sqrt(in))."""
    dims = [(IN_DIM, HIDDEN), (HIDDEN, HIDDEN), (HIDDEN, OUT_DIM)]
    params = []
    keys = jax.random.split(key, 2 * len(dims))
    for i, (fan_in, fan_out) in enumerate(dims):
        bound = 1.0 / math.sqrt(fan_in)
        w = jax.random.uniform(keys[2 * i], (fan_in, fan_out), jnp.float32,
                               minval=-bound, maxval=bound)
        b = jax.random.uniform(keys[2 * i + 1], (1, fan_out), jnp.float32,
                               minval=-bound, maxval=bound)
        params += [w, b]
    return tuple(params)


def reference_forward(x, params):
    """Pure-JAX f32 reference of the PyTorch forward (batched)."""
    w1, b1, w2, b2, w3, b3 = params
    hp = jax.lax.Precision.HIGHEST
    h = jnp.maximum(jnp.dot(x, w1, precision=hp) + b1, 0.0)
    h = jnp.maximum(jnp.dot(h, w2, precision=hp) + b2, 0.0)
    h = jnp.dot(h, w3, precision=hp) + b3
    return h[:, 0], jnp.logaddexp(h[:, 1], 0.0)


def reference_forward_bf16(x, params):
    """Reference mirroring the kernel's bf16 MXU inputs / f32 accumulation."""
    w1, b1, w2, b2, w3, b3 = params
    hp = jax.lax.Precision.HIGHEST
    h = jnp.maximum(jnp.dot(x, w1, precision=hp) + b1, 0.0)
    h = jnp.maximum(jnp.dot(h.astype(jnp.bfloat16), w2.astype(jnp.bfloat16),
                            preferred_element_type=jnp.float32) + b2, 0.0)
    h = jnp.dot(h.astype(jnp.bfloat16), w3.astype(jnp.bfloat16),
                preferred_element_type=jnp.float32) + b3
    return h[:, 0], jnp.logaddexp(h[:, 1], 0.0)


if __name__ == "__main__":
    key = jax.random.PRNGKey(0)
    pkey, xkey = jax.random.split(key)
    params = init_params(pkey)
    prep = prepare_params(params)          # one-time (transpose + bf16 cast)

    # Small batch of CartPole-continuous style states: (B, 4)
    B = 8
    x = jax.random.normal(xkey, (B, IN_DIM), jnp.float32)

    mean, std = policy_net_forward(x, prep)
    jax.block_until_ready((mean, std))
    assert mean.shape == (B,) and std.shape == (B,)

    # Tight check against a reference with matching bf16-MXU / f32-accumulate numerics.
    ref_mean_b, ref_std_b = reference_forward_bf16(x, params)
    assert jnp.allclose(mean, ref_mean_b, atol=1e-4, rtol=1e-4)
    assert jnp.allclose(std, ref_std_b, atol=1e-4, rtol=1e-4)

    # Loose check against the exact f32 semantics of the PyTorch module.
    ref_mean, ref_std = reference_forward(x, params)
    assert jnp.allclose(mean, ref_mean, atol=2e-2, rtol=2e-2)
    assert jnp.allclose(std, ref_std, atol=2e-2, rtol=2e-2)

    # Unbatched (single-state) path matching the PyTorch forward semantics.
    m1, s1 = policy_net_forward(x[0], prep)
    jax.block_until_ready((m1, s1))
    assert jnp.allclose(m1, ref_mean[0], atol=2e-2, rtol=2e-2)
    assert jnp.allclose(s1, ref_std[0], atol=2e-2, rtol=2e-2)

    print("KERNEL_OK")
</pallas_src>

<mosaic_0001>
module attributes {stable_mosaic.version = 11 : i64} {
  func.func @policy_kernel(%arg0: i32, %arg1: memref<4x128xf32, #tpu.memory_space<vmem>>, %arg2: memref<128x4xf32, #tpu.memory_space<vmem>>, %arg3: memref<128x1xf32, #tpu.memory_space<vmem>>, %arg4: memref<128x128xbf16, #tpu.memory_space<vmem>>, %arg5: memref<128x1xf32, #tpu.memory_space<vmem>>, %arg6: memref<2x128xbf16, #tpu.memory_space<vmem>>, %arg7: memref<2x1xf32, #tpu.memory_space<vmem>>, %arg8: memref<2x128xf32, #tpu.memory_space<vmem>>) attributes {dimension_semantics = [#tpu.dimension_semantics<parallel>], iteration_bounds = array<i64: 1>, scalar_prefetch = 0 : i64, scratch_operands = 0 : i64, tpu.core_type = #tpu.core_type<tc>, window_params = [{transform_indices = @transform_0, window_bounds = array<i64: 4, 128>}, {pipeline_mode = #tpu.pipeline_mode<synchronous>, transform_indices = @transform_1, window_bounds = array<i64: 128, 4>}, {pipeline_mode = #tpu.pipeline_mode<synchronous>, transform_indices = @transform_2, window_bounds = array<i64: 128, 1>}, {pipeline_mode = #tpu.pipeline_mode<synchronous>, transform_indices = @transform_3, window_bounds = array<i64: 128, 128>}, {pipeline_mode = #tpu.pipeline_mode<synchronous>, transform_indices = @transform_4, window_bounds = array<i64: 128, 1>}, {pipeline_mode = #tpu.pipeline_mode<synchronous>, transform_indices = @transform_5, window_bounds = array<i64: 2, 128>}, {pipeline_mode = #tpu.pipeline_mode<synchronous>, transform_indices = @transform_6, window_bounds = array<i64: 2, 1>}, {transform_indices = @transform_7, window_bounds = array<i64: 2, 128>}]} {
    %c0 = arith.constant 0 : index
    %c0_0 = arith.constant 0 : index
    %0 = vector.load %arg1[%c0, %c0_0] : memref<4x128xf32, #tpu.memory_space<vmem>>, vector<4x128xf32>
    %c0_1 = arith.constant 0 : index
    %c0_2 = arith.constant 0 : index
    %1 = vector.load %arg2[%c0_1, %c0_2] : memref<128x4xf32, #tpu.memory_space<vmem>>, vector<128x4xf32>
    %2 = vector.extract_strided_slice %1 {offsets = [0, 0], sizes = [128, 1], strides = [1, 1]} : vector<128x4xf32> to vector<128x1xf32>
    %3 = vector.extract_strided_slice %0 {offsets = [0, 0], sizes = [1, 128], strides = [1, 1]} : vector<4x128xf32> to vector<1x128xf32>
    %4 = vector.broadcast %2 : vector<128x1xf32> to vector<128x128xf32>
    %5 = vector.broadcast %3 : vector<1x128xf32> to vector<128x128xf32>
    %6 = arith.mulf %4, %5 : vector<128x128xf32>
    %7 = vector.extract_strided_slice %1 {offsets = [0, 1], sizes = [128, 1], strides = [1, 1]} : vector<128x4xf32> to vector<128x1xf32>
    %8 = vector.extract_strided_slice %0 {offsets = [1, 0], sizes = [1, 128], strides = [1, 1]} : vector<4x128xf32> to vector<1x128xf32>
    %9 = vector.broadcast %7 : vector<128x1xf32> to vector<128x128xf32>
    %10 = vector.broadcast %8 : vector<1x128xf32> to vector<128x128xf32>
    %11 = arith.mulf %9, %10 : vector<128x128xf32>
    %12 = arith.addf %6, %11 : vector<128x128xf32>
    %13 = vector.extract_strided_slice %1 {offsets = [0, 2], sizes = [128, 1], strides = [1, 1]} : vector<128x4xf32> to vector<128x1xf32>
    %14 = vector.extract_strided_slice %0 {offsets = [2, 0], sizes = [1, 128], strides = [1, 1]} : vector<4x128xf32> to vector<1x128xf32>
    %15 = vector.broadcast %13 : vector<128x1xf32> to vector<128x128xf32>
    %16 = vector.broadcast %14 : vector<1x128xf32> to vector<128x128xf32>
    %17 = arith.mulf %15, %16 : vector<128x128xf32>
    %18 = arith.addf %12, %17 : vector<128x128xf32>
    %19 = vector.extract_strided_slice %1 {offsets = [0, 3], sizes = [128, 1], strides = [1, 1]} : vector<128x4xf32> to vector<128x1xf32>
    %20 = vector.extract_strided_slice %0 {offsets = [3, 0], sizes = [1, 128], strides = [1, 1]} : vector<4x128xf32> to vector<1x128xf32>
    %21 = vector.broadcast %19 : vector<128x1xf32> to vector<128x128xf32>
    %22 = vector.broadcast %20 : vector<1x128xf32> to vector<128x128xf32>
    %23 = arith.mulf %21, %22 : vector<128x128xf32>
    %24 = arith.addf %18, %23 : vector<128x128xf32>
    %c0_3 = arith.constant 0 : index
    %c0_4 = arith.constant 0 : index
    %25 = vector.load %arg3[%c0_3, %c0_4] : memref<128x1xf32, #tpu.memory_space<vmem>>, vector<128x1xf32>
    %26 = vector.broadcast %25 : vector<128x1xf32> to vector<128x128xf32>
    %27 = arith.addf %24, %26 : vector<128x128xf32>
    %cst = arith.constant 0.000000e+00 : f32
    %28 = vector.broadcast %cst : f32 to vector<128x128xf32>
    %29 = arith.maximumf %27, %28 : vector<128x128xf32>
    %c0_5 = arith.constant 0 : index
    %c0_6 = arith.constant 0 : index
    %30 = vector.load %arg4[%c0_5, %c0_6] : memref<128x128xbf16, #tpu.memory_space<vmem>>, vector<128x128xbf16>
    %31 = arith.truncf %29 : vector<128x128xf32> to vector<128x128xbf16>
    %cst_7 = arith.constant dense<0.000000e+00> : vector<128x128xf32>
    %32 = tpu.matmul %30, %31, %cst_7 {dimension_numbers = #tpu.dot_dimension_numbers<[1], [0], [0], [1], [0, 0, 1, 1], [], []>} : vector<128x128xbf16>, vector<128x128xbf16>, vector<128x128xf32> -> vector<128x128xf32>
    %c0_8 = arith.constant 0 : index
    %c0_9 = arith.constant 0 : index
    %33 = vector.load %arg5[%c0_8, %c0_9] : memref<128x1xf32, #tpu.memory_space<vmem>>, vector<128x1xf32>
    %34 = vector.broadcast %33 : vector<128x1xf32> to vector<128x128xf32>
    %35 = arith.addf %32, %34 : vector<128x128xf32>
    %cst_10 = arith.constant 0.000000e+00 : f32
    %36 = vector.broadcast %cst_10 : f32 to vector<128x128xf32>
    %37 = arith.maximumf %35, %36 : vector<128x128xf32>
    %c0_11 = arith.constant 0 : index
    %c0_12 = arith.constant 0 : index
    %38 = vector.load %arg6[%c0_11, %c0_12] : memref<2x128xbf16, #tpu.memory_space<vmem>>, vector<2x128xbf16>
    %39 = arith.truncf %37 : vector<128x128xf32> to vector<128x128xbf16>
    %cst_13 = arith.constant dense<0.000000e+00> : vector<2x128xf32>
    %40 = tpu.matmul %38, %39, %cst_13 {dimension_numbers = #tpu.dot_dimension_numbers<[1], [0], [0], [1], [0, 0, 1, 1], [], []>} : vector<2x128xbf16>, vector<128x128xbf16>, vector<2x128xf32> -> vector<2x128xf32>
    %c0_14 = arith.constant 0 : index
    %c0_15 = arith.constant 0 : index
    %41 = vector.load %arg7[%c0_14, %c0_15] : memref<2x1xf32, #tpu.memory_space<vmem>>, vector<2x1xf32>
    %42 = vector.broadcast %41 : vector<2x1xf32> to vector<2x128xf32>
    %43 = arith.addf %40, %42 : vector<2x128xf32>
    %44 = tpu.iota {dimensions = array<i32: 0>} : vector<2x128xi32>
    %c1_i32 = arith.constant 1 : i32
    %45 = vector.broadcast %c1_i32 : i32 to vector<2x128xi32>
    %46 = arith.cmpi eq, %44, %45 : vector<2x128xi32>
    %cst_16 = arith.constant 0.000000e+00 : f32
    %47 = vector.broadcast %cst_16 : f32 to vector<2x128xf32>
    %48 = arith.maximumf %43, %47 : vector<2x128xf32>
    %49 = vector.broadcast %cst_16 : f32 to vector<2x128xf32>
    %50 = arith.subf %43, %49 : vector<2x128xf32>
    %51 = arith.cmpf one, %50, %50 : vector<2x128xf32>
    %52 = vector.broadcast %cst_16 : f32 to vector<2x128xf32>
    %53 = arith.addf %43, %52 : vector<2x128xf32>
    %54 = math.absf %50 : vector<2x128xf32>
    %cst_17 = arith.constant 0.000000e+00 : f32
    %55 = vector.broadcast %cst_17 : f32 to vector<2x128xf32>
    %56 = arith.subf %55, %54 : vector<2x128xf32>
    %57 = math.exp %56 : vector<2x128xf32>
    %58 = math.log1p %57 : vector<2x128xf32>
    %59 = arith.addf %48, %58 : vector<2x128xf32>
    %60 = arith.select %51, %53, %59 : vector<2x128xi1>, vector<2x128xf32>
    %61 = arith.select %46, %60, %43 : vector<2x128xi1>, vector<2x128xf32>
    %c0_18 = arith.constant 0 : index
    %c0_19 = arith.constant 0 : index
    %62 = vector.load %arg8[%c0_18, %c0_19] : memref<2x128xf32, #tpu.memory_space<vmem>>, vector<2x128xf32>
    tpu.vector_store %arg8[%c0_18, %c0_19], %61 {strides = array<i32>} : memref<2x128xf32, #tpu.memory_space<vmem>>, vector<2x128xf32>,
    return
  }
  func.func @transform_0(%arg0: i32) -> (i32, i32) {
    %c0_i32 = arith.constant 0 : i32
    %c0_i32_0 = arith.constant 0 : i32
    return %c0_i32, %arg0 : i32, i32
  }
  func.func @transform_1(%arg0: i32) -> (i32, i32) {
    %c0_i32 = arith.constant 0 : i32
    %c0_i32_0 = arith.constant 0 : i32
    %c0_i32_1 = arith.constant 0 : i32
    return %c0_i32, %c0_i32_0 : i32, i32
  }
  func.func @transform_2(%arg0: i32) -> (i32, i32) {
    %c0_i32 = arith.constant 0 : i32
    %c0_i32_0 = arith.constant 0 : i32
    %c0_i32_1 = arith.constant 0 : i32
    return %c0_i32, %c0_i32_0 : i32, i32
  }
  func.func @transform_3(%arg0: i32) -> (i32, i32) {
    %c0_i32 = arith.constant 0 : i32
    %c0_i32_0 = arith.constant 0 : i32
    %c0_i32_1 = arith.constant 0 : i32
    return %c0_i32, %c0_i32_0 : i32, i32
  }
  func.func @transform_4(%arg0: i32) -> (i32, i32) {
    %c0_i32 = arith.constant 0 : i32
    %c0_i32_0 = arith.constant 0 : i32
    %c0_i32_1 = arith.constant 0 : i32
    return %c0_i32, %c0_i32_0 : i32, i32
  }
  func.func @transform_5(%arg0: i32) -> (i32, i32) {
    %c0_i32 = arith.constant 0 : i32
    %c0_i32_0 = arith.constant 0 : i32
    %c0_i32_1 = arith.constant 0 : i32
    return %c0_i32, %c0_i32_0 : i32, i32
  }
  func.func @transform_6(%arg0: i32) -> (i32, i32) {
    %c0_i32 = arith.constant 0 : i32
    %c0_i32_0 = arith.constant 0 : i32
    %c0_i32_1 = arith.constant 0 : i32
    return %c0_i32, %c0_i32_0 : i32, i32
  }
  func.func @transform_7(%arg0: i32) -> (i32, i32) {
    %c0_i32 = arith.constant 0 : i32
    %c0_i32_0 = arith.constant 0 : i32
    return %c0_i32, %arg0 : i32, i32
  }
}

</mosaic_0001>

<llo_original>
// kernel: policy_net_forward.1
$region0: #{policy_net_forward.1}
  #allocation0 [shape = 'u32[]', space=smem, size = 0x4, offset = 0x4, fixed_abs, tag = 'smem constant byte address 0x4 - core index']
  #allocation1 [shape = 'u32[144,128]{1,0:T(1,128)}', space=vmem, size = 0x12000, scoped, tag = 'internal scratch']
  %s0 = inlined_call_operand.vmem [shape: f32[4,128], index: 0, kind: input, shape index: {}]
  %s1 = inlined_call_operand.vmem [shape: f32[128,4], index: 1, kind: input, shape index: {}]
  %s2 = inlined_call_operand.vmem [shape: f32[128,1], index: 2, kind: input, shape index: {}]
  %s3 = inlined_call_operand.vmem [shape: bf16[128,128], index: 3, kind: input, shape index: {}]
  %s4 = inlined_call_operand.vmem [shape: f32[128,1], index: 4, kind: input, shape index: {}]
  %s5 = inlined_call_operand.vmem [shape: bf16[2,128], index: 5, kind: input, shape index: {}]
  %s6 = inlined_call_operand.vmem [shape: f32[2,1], index: 6, kind: input, shape index: {}]
  %s7 = inlined_call_operand.vmem [shape: f32[2,128], index: 7, kind: output, shape index: {}]
  %s8 = sld [smem:[#allocation0]]
  $region38: #{policy_net_forward.1} parent=0
    _
  %s10 = ssub.s32 1, %s8
  %s11 = scalar_select 0, %s10, %s8
  // Predicated region
  $region2: #{policy_net_forward.1} parent=0 // pred_check
    _
  $region3: #{policy_net_forward.1} parent=0 // pred_check_branch
    %13 = sbr.rel (0) target = $region5
  $region4: #{policy_net_forward.1} parent=0 // pred_region
    _
  $region5: #{policy_net_forward.1} parent=0 // pred_fallthru
    _
  // Predicated region
  $region6: #{policy_net_forward.1} parent=0 // pred_check
    _
  $region7: #{policy_net_forward.1} parent=0 // pred_check_branch
    %15 = sbr.rel (0) target = $region9
  $region8: #{policy_net_forward.1} parent=0 // pred_region
    _
  $region9: #{policy_net_forward.1} parent=0 // pred_fallthru
    _
  // Predicated region
  $region10: #{policy_net_forward.1} parent=0 // pred_check
    _
  $region11: #{policy_net_forward.1} parent=0 // pred_check_branch
    %17 = sbr.rel (0) target = $region13
  $region12: #{policy_net_forward.1} parent=0 // pred_region
    _
  $region13: #{policy_net_forward.1} parent=0 // pred_fallthru
    _
  // Predicated region
  $region14: #{policy_net_forward.1} parent=0 // pred_check
    _
  $region15: #{policy_net_forward.1} parent=0 // pred_check_branch
    %19 = sbr.rel (0) target = $region17
  $region16: #{policy_net_forward.1} parent=0 // pred_region
    _
  $region17: #{policy_net_forward.1} parent=0 // pred_fallthru
    _
  // Predicated region
  $region18: #{policy_net_forward.1} parent=0 // pred_check
    _
  $region19: #{policy_net_forward.1} parent=0 // pred_check_branch
    %21 = sbr.rel (0) target = $region21
  $region20: #{policy_net_forward.1} parent=0 // pred_region
    _
  $region21: #{policy_net_forward.1} parent=0 // pred_fallthru
    _
  // Predicated region
  $region22: #{policy_net_forward.1} parent=0 // pred_check
    _
  $region23: #{policy_net_forward.1} parent=0 // pred_check_branch
    %23 = sbr.rel (0) target = $region25
  $region24: #{policy_net_forward.1} parent=0 // pred_region
    _
  $region25: #{policy_net_forward.1} parent=0 // pred_fallthru
    _
  // Predicated region
  $region26: #{policy_net_forward.1} parent=0 // pred_check
    _
  $region27: #{policy_net_forward.1} parent=0 // pred_check_branch
    %25 = sbr.rel (0) target = $region29
  $region28: #{policy_net_forward.1} parent=0 // pred_region
    _
  $region29: #{policy_net_forward.1} parent=0 // pred_fallthru
    _
  %v27 = vld [vmem:[%s0] sm:$0xf]
  %v28 = vld [vmem:[%s1] sm:$0xff]
  %v29 = vld [vmem:[%s1 + $0x8] sm:$0xff]
  %v30 = vld [vmem:[%s1 + $0x10] sm:$0xff]
  %v31 = vld [vmem:[%s1 + $0x18] sm:$0xff]
  %v32 = vld [vmem:[%s1 + $0x20] sm:$0xff]
  %v33 = vld [vmem:[%s1 + $0x28] sm:$0xff]
  %v34 = vld [vmem:[%s1 + $0x30] sm:$0xff]
  %v35 = vld [vmem:[%s1 + $0x38] sm:$0xff]
  %v36 = vld [vmem:[%s1 + $0x40] sm:$0xff]
  %v37 = vld [vmem:[%s1 + $0x48] sm:$0xff]
  %v38 = vld [vmem:[%s1 + $0x50] sm:$0xff]
  %v39 = vld [vmem:[%s1 + $0x58] sm:$0xff]
  %v40 = vld [vmem:[%s1 + $0x60] sm:$0xff]
  %v41 = vld [vmem:[%s1 + $0x68] sm:$0xff]
  %v42 = vld [vmem:[%s1 + $0x70] sm:$0xff]
  %v43 = vld [vmem:[%s1 + $0x78] sm:$0xff]
  %45 = vset.pattern.permute.xlu0 0
  %46 = vperm.xlu0 %45, %v28
  %v47 = vpop.permute.xlu0 %46
  %50 = vset.pattern.permute.xlu0 0
  %51 = vperm.xlu0 %50, %v29
  %v52 = vpop.permute.xlu0 %51
  %55 = vset.pattern.permute.xlu0 0
  %56 = vperm.xlu0 %55, %v30
  %v57 = vpop.permute.xlu0 %56
  %60 = vset.pattern.permute.xlu0 0
  %61 = vperm.xlu0 %60, %v31
  %v62 = vpop.permute.xlu0 %61
  %65 = vset.pattern.permute.xlu0 0
  %66 = vperm.xlu0 %65, %v32
  %v67 = vpop.permute.xlu0 %66
  %70 = vset.pattern.permute.xlu0 0
  %71 = vperm.xlu0 %70, %v33
  %v72 = vpop.permute.xlu0 %71
  %75 = vset.pattern.permute.xlu0 0
  %76 = vperm.xlu0 %75, %v34
  %v77 = vpop.permute.xlu0 %76
  %80 = vset.pattern.permute.xlu0 0
  %81 = vperm.xlu0 %80, %v35
  %v82 = vpop.permute.xlu0 %81
  %85 = vset.pattern.permute.xlu0 0
  %86 = vperm.xlu0 %85, %v36
  %v87 = vpop.permute.xlu0 %86
  %90 = vset.pattern.permute.xlu0 0
  %91 = vperm.xlu0 %90, %v37
  %v92 = vpop.permute.xlu0 %91
  %95 = vset.pattern.permute.xlu0 0
  %96 = vperm.xlu0 %95, %v38
  %v97 = vpop.permute.xlu0 %96
  %100 = vset.pattern.permute.xlu0 0
  %101 = vperm.xlu0 %100, %v39
  %v102 = vpop.permute.xlu0 %101
  %105 = vset.pattern.permute.xlu0 0
  %106 = vperm.xlu0 %105, %v40
  %v107 = vpop.permute.xlu0 %106
  %110 = vset.pattern.permute.xlu0 0
  %111 = vperm.xlu0 %110, %v41
  %v112 = vpop.permute.xlu0 %111
  %115 = vset.pattern.permute.xlu0 0
  %116 = vperm.xlu0 %115, %v42
  %v117 = vpop.permute.xlu0 %116
  %120 = vset.pattern.permute.xlu0 0
  %121 = vperm.xlu0 %120, %v43
  %v122 = vpop.permute.xlu0 %121
  %v124 = vlaneseq
  %v125 = vshrl.u32 %v124, 7
  %v126 = vsub.s32 0, %v125
  %v127 = vrot.slane %v27, %v126
  %v128 = vmul.f32 %v47, %v127
  %v129 = vmul.f32 %v52, %v127
  %v130 = vmul.f32 %v57, %v127
  %v131 = vmul.f32 %v62, %v127
  %v132 = vmul.f32 %v67, %v127
  %v133 = vmul.f32 %v72, %v127
  %v134 = vmul.f32 %v77, %v127
  %v135 = vmul.f32 %v82, %v127
  %v136 = vmul.f32 %v87, %v127
  %v137 = vmul.f32 %v92, %v127
  %v138 = vmul.f32 %v97, %v127
  %v139 = vmul.f32 %v102, %v127
  %v140 = vmul.f32 %v107, %v127
  %v141 = vmul.f32 %v112, %v127
  %v142 = vmul.f32 %v117, %v127
  %v143 = vmul.f32 %v122, %v127
  %144 = vset.pattern.permute.xlu0 1
  %145 = vperm.xlu0 %144, %v28
  %v146 = vpop.permute.xlu0 %145
  %148 = vset.pattern.permute.xlu0 1
  %149 = vperm.xlu0 %148, %v29
  %v150 = vpop.permute.xlu0 %149
  %152 = vset.pattern.permute.xlu0 1
  %153 = vperm.xlu0 %152, %v30
  %v154 = vpop.permute.xlu0 %153
  %156 = vset.pattern.permute.xlu0 1
  %157 = vperm.xlu0 %156, %v31
  %v158 = vpop.permute.xlu0 %157
  %160 = vset.pattern.permute.xlu0 1
  %161 = vperm.xlu0 %160, %v32
  %v162 = vpop.permute.xlu0 %161
  %164 = vset.pattern.permute.xlu0 1
  %165 = vperm.xlu0 %164, %v33
  %v166 = vpop.permute.xlu0 %165
  %168 = vset.pattern.permute.xlu0 1
  %169 = vperm.xlu0 %168, %v34
  %v170 = vpop.permute.xlu0 %169
  %172 = vset.pattern.permute.xlu0 1
  %173 = vperm.xlu0 %172, %v35
  %v174 = vpop.permute.xlu0 %173
  %176 = vset.pattern.permute.xlu0 1
  %177 = vperm.xlu0 %176, %v36
  %v178 = vpop.permute.xlu0 %177
  %180 = vset.pattern.permute.xlu0 1
  %181 = vperm.xlu0 %180, %v37
  %v182 = vpop.permute.xlu0 %181
  %184 = vset.pattern.permute.xlu0 1
  %185 = vperm.xlu0 %184, %v38
  %v186 = vpop.permute.xlu0 %185
  %188 = vset.pattern.permute.xlu0 1
  %189 = vperm.xlu0 %188, %v39
  %v190 = vpop.permute.xlu0 %189
  %192 = vset.pattern.permute.xlu0 1
  %193 = vperm.xlu0 %192, %v40
  %v194 = vpop.permute.xlu0 %193
  %196 = vset.pattern.permute.xlu0 1
  %197 = vperm.xlu0 %196, %v41
  %v198 = vpop.permute.xlu0 %197
  %200 = vset.pattern.permute.xlu0 1
  %201 = vperm.xlu0 %200, %v42
  %v202 = vpop.permute.xlu0 %201
  %204 = vset.pattern.permute.xlu0 1
  %205 = vperm.xlu0 %204, %v43
  %v206 = vpop.permute.xlu0 %205
  %v208 = vlaneseq
  %v209 = vshrl.u32 %v208, 7
  %v210 = vsub.s32 1, %v209
  %v211 = vrot.slane %v27, %v210
  %v212 = vmul.f32 %v146, %v211
  %v213 = vmul.f32 %v150, %v211
  %v214 = vmul.f32 %v154, %v211
  %v215 = vmul.f32 %v158, %v211
  %v216 = vmul.f32 %v162, %v211
  %v217 = vmul.f32 %v166, %v211
  %v218 = vmul.f32 %v170, %v211
  %v219 = vmul.f32 %v174, %v211
  %v220 = vmul.f32 %v178, %v211
  %v221 = vmul.f32 %v182, %v211
  %v222 = vmul.f32 %v186, %v211
  %v223 = vmul.f32 %v190, %v211
  %v224 = vmul.f32 %v194, %v211
  %v225 = vmul.f32 %v198, %v211
  %v226 = vmul.f32 %v202, %v211
  %v227 = vmul.f32 %v206, %v211
  %v228 = vadd.f32 %v128, %v212
  %v229 = vadd.f32 %v129, %v213
  %v230 = vadd.f32 %v130, %v214
  %v231 = vadd.f32 %v131, %v215
  %v232 = vadd.f32 %v132, %v216
  %v233 = vadd.f32 %v133, %v217
  %v234 = vadd.f32 %v134, %v218
  %v235 = vadd.f32 %v135, %v219
  %v236 = vadd.f32 %v136, %v220
  %v237 = vadd.f32 %v137, %v221
  %v238 = vadd.f32 %v138, %v222
  %v239 = vadd.f32 %v139, %v223
  %v240 = vadd.f32 %v140, %v224
  %v241 = vadd.f32 %v141, %v225
  %v242 = vadd.f32 %v142, %v226
  %v243 = vadd.f32 %v143, %v227
  %244 = vset.pattern.permute.xlu0 2
  %245 = vperm.xlu0 %244, %v28
  %v246 = vpop.permute.xlu0 %245
  %248 = vset.pattern.permute.xlu0 2
  %249 = vperm.xlu0 %248, %v29
  %v250 = vpop.permute.xlu0 %249
  %252 = vset.pattern.permute.xlu0 2
  %253 = vperm.xlu0 %252, %v30
  %v254 = vpop.permute.xlu0 %253
  %256 = vset.pattern.permute.xlu0 2
  %257 = vperm.xlu0 %256, %v31
  %v258 = vpop.permute.xlu0 %257
  %260 = vset.pattern.permute.xlu0 2
  %261 = vperm.xlu0 %260, %v32
  %v262 = vpop.permute.xlu0 %261
  %264 = vset.pattern.permute.xlu0 2
  %265 = vperm.xlu0 %264, %v33
  %v266 = vpop.permute.xlu0 %265
  %268 = vset.pattern.permute.xlu0 2
  %269 = vperm.xlu0 %268, %v34
  %v270 = vpop.permute.xlu0 %269
  %272 = vset.pattern.permute.xlu0 2
  %273 = vperm.xlu0 %272, %v35
  %v274 = vpop.permute.xlu0 %273
  %276 = vset.pattern.permute.xlu0 2
  %277 = vperm.xlu0 %276, %v36
  %v278 = vpop.permute.xlu0 %277
  %280 = vset.pattern.permute.xlu0 2
  %281 = vperm.xlu0 %280, %v37
  %v282 = vpop.permute.xlu0 %281
  %284 = vset.pattern.permute.xlu0 2
  %285 = vperm.xlu0 %284, %v38
  %v286 = vpop.permute.xlu0 %285
  %288 = vset.pattern.permute.xlu0 2
  %289 = vperm.xlu0 %288, %v39
  %v290 = vpop.permute.xlu0 %289
  %292 = vset.pattern.permute.xlu0 2
  %293 = vperm.xlu0 %292, %v40
  %v294 = vpop.permute.xlu0 %293
  %296 = vset.pattern.permute.xlu0 2
  %297 = vperm.xlu0 %296, %v41
  %v298 = vpop.permute.xlu0 %297
  %300 = vset.pattern.permute.xlu0 2
  %301 = vperm.xlu0 %300, %v42
  %v302 = vpop.permute.xlu0 %301
  %304 = vset.pattern.permute.xlu0 2
  %305 = vperm.xlu0 %304, %v43
  %v306 = vpop.permute.xlu0 %305
  %v308 = vlaneseq
  %v309 = vshrl.u32 %v308, 7
  %v310 = vsub.s32 2, %v309
  %v311 = vrot.slane %v27, %v310
  %v312 = vmul.f32 %v246, %v311
  %v313 = vmul.f32 %v250, %v311
  %v314 = vmul.f32 %v254, %v311
  %v315 = vmul.f32 %v258, %v311
  %v316 = vmul.f32 %v262, %v311
  %v317 = vmul.f32 %v266, %v311
  %v318 = vmul.f32 %v270, %v311
  %v319 = vmul.f32 %v274, %v311
  %v320 = vmul.f32 %v278, %v311
  %v321 = vmul.f32 %v282, %v311
  %v322 = vmul.f32 %v286, %v311
  %v323 = vmul.f32 %v290, %v311
  %v324 = vmul.f32 %v294, %v311
  %v325 = vmul.f32 %v298, %v311
  %v326 = vmul.f32 %v302, %v311
  %v327 = vmul.f32 %v306, %v311
  %v328 = vadd.f32 %v228, %v312
  %v329 = vadd.f32 %v229, %v313
  %v330 = vadd.f32 %v230, %v314
  %v331 = vadd.f32 %v231, %v315
  %v332 = vadd.f32 %v232, %v316
  %v333 = vadd.f32 %v233, %v317
  %v334 = vadd.f32 %v234, %v318
  %v335 = vadd.f32 %v235, %v319
  %v336 = vadd.f32 %v236, %v320
  %v337 = vadd.f32 %v237, %v321
  %v338 = vadd.f32 %v238, %v322
  %v339 = vadd.f32 %v239, %v323
  %v340 = vadd.f32 %v240, %v324
  %v341 = vadd.f32 %v241, %v325
  %v342 = vadd.f32 %v242, %v326
  %v343 = vadd.f32 %v243, %v327
  %344 = vset.pattern.permute.xlu0 3
  %345 = vperm.xlu0 %344, %v28
  %v346 = vpop.permute.xlu0 %345
  %348 = vset.pattern.permute.xlu0 3
  %349 = vperm.xlu0 %348, %v29
  %v350 = vpop.permute.xlu0 %349
  %352 = vset.pattern.permute.xlu0 3
  %353 = vperm.xlu0 %352, %v30
  %v354 = vpop.permute.xlu0 %353
  %356 = vset.pattern.permute.xlu0 3
  %357 = vperm.xlu0 %356, %v31
  %v358 = vpop.permute.xlu0 %357
  %360 = vset.pattern.permute.xlu0 3
  %361 = vperm.xlu0 %360, %v32
  %v362 = vpop.permute.xlu0 %361
  %364 = vset.pattern.permute.xlu0 3
  %365 = vperm.xlu0 %364, %v33
  %v366 = vpop.permute.xlu0 %365
  %368 = vset.pattern.permute.xlu0 3
  %369 = vperm.xlu0 %368, %v34
  %v370 = vpop.permute.xlu0 %369
  %372 = vset.pattern.permute.xlu0 3
  %373 = vperm.xlu0 %372, %v35
  %v374 = vpop.permute.xlu0 %373
  %376 = vset.pattern.permute.xlu0 3
  %377 = vperm.xlu0 %376, %v36
  %v378 = vpop.permute.xlu0 %377
  %380 = vset.pattern.permute.xlu0 3
  %381 = vperm.xlu0 %380, %v37
  %v382 = vpop.permute.xlu0 %381
  %384 = vset.pattern.permute.xlu0 3
  %385 = vperm.xlu0 %384, %v38
  %v386 = vpop.permute.xlu0 %385
  %388 = vset.pattern.permute.xlu0 3
  %389 = vperm.xlu0 %388, %v39
  %v390 = vpop.permute.xlu0 %389
  %392 = vset.pattern.permute.xlu0 3
  %393 = vperm.xlu0 %392, %v40
  %v394 = vpop.permute.xlu0 %393
  %396 = vset.pattern.permute.xlu0 3
  %397 = vperm.xlu0 %396, %v41
  %v398 = vpop.permute.xlu0 %397
  %400 = vset.pattern.permute.xlu0 3
  %401 = vperm.xlu0 %400, %v42
  %v402 = vpop.permute.xlu0 %401
  %404 = vset.pattern.permute.xlu0 3
  %405 = vperm.xlu0 %404, %v43
  %v406 = vpop.permute.xlu0 %405
  %v408 = vlaneseq
  %v409 = vshrl.u32 %v408, 7
  %v410 = vsub.s32 3, %v409
  %v411 = vrot.slane %v27, %v410
  %v412 = vmul.f32 %v346, %v411
  %v413 = vmul.f32 %v350, %v411
  %v414 = vmul.f32 %v354, %v411
  %v415 = vmul.f32 %v358, %v411
  %v416 = vmul.f32 %v362, %v411
  %v417 = vmul.f32 %v366, %v411
  %v418 = vmul.f32 %v370, %v411
  %v419 = vmul.f32 %v374, %v411
  %v420 = vmul.f32 %v378, %v411
  %v421 = vmul.f32 %v382, %v411
  %v422 = vmul.f32 %v386, %v411
  %v423 = vmul.f32 %v390, %v411
  %v424 = vmul.f32 %v394, %v411
  %v425 = vmul.f32 %v398, %v411
  %v426 = vmul.f32 %v402, %v411
  %v427 = vmul.f32 %v406, %v411
  %v428 = vadd.f32 %v328, %v412
  %v429 = vadd.f32 %v329, %v413
  %v430 = vadd.f32 %v330, %v414
  %v431 = vadd.f32 %v331, %v415
  %v432 = vadd.f32 %v332, %v416
  %v433 = vadd.f32 %v333, %v417
  %v434 = vadd.f32 %v334, %v418
  %v435 = vadd.f32 %v335, %v419
  %v436 = vadd.f32 %v336, %v420
  %v437 = vadd.f32 %v337, %v421
  %v438 = vadd.f32 %v338, %v422
  %v439 = vadd.f32 %v339, %v423
  %v440 = vadd.f32 %v340, %v424
  %v441 = vadd.f32 %v341, %v425
  %v442 = vadd.f32 %v342, %v426
  %v443 = vadd.f32 %v343, %v427
  %v444 = vld [vmem:[%s2] sm:$0xff]
  %v445 = vld [vmem:[%s2 + $0x8] sm:$0xff]
  %v446 = vld [vmem:[%s2 + $0x10] sm:$0xff]
  %v447 = vld [vmem:[%s2 + $0x18] sm:$0xff]
  %v448 = vld [vmem:[%s2 + $0x20] sm:$0xff]
  %v449 = vld [vmem:[%s2 + $0x28] sm:$0xff]
  %v450 = vld [vmem:[%s2 + $0x30] sm:$0xff]
  %v451 = vld [vmem:[%s2 + $0x38] sm:$0xff]
  %v452 = vld [vmem:[%s2 + $0x40] sm:$0xff]
  %v453 = vld [vmem:[%s2 + $0x48] sm:$0xff]
  %v454 = vld [vmem:[%s2 + $0x50] sm:$0xff]
  %v455 = vld [vmem:[%s2 + $0x58] sm:$0xff]
  %v456 = vld [vmem:[%s2 + $0x60] sm:$0xff]
  %v457 = vld [vmem:[%s2 + $0x68] sm:$0xff]
  %v458 = vld [vmem:[%s2 + $0x70] sm:$0xff]
  %v459 = vld [vmem:[%s2 + $0x78] sm:$0xff]
  %461 = vset.pattern.permute.xlu0 0
  %462 = vperm.xlu0 %461, %v444
  %v463 = vpop.permute.xlu0 %462
  %466 = vset.pattern.permute.xlu0 0
  %467 = vperm.xlu0 %466, %v445
  %v468 = vpop.permute.xlu0 %467
  %471 = vset.pattern.permute.xlu0 0
  %472 = vperm.xlu0 %471, %v446
  %v473 = vpop.permute.xlu0 %472
  %476 = vset.pattern.permute.xlu0 0
  %477 = vperm.xlu0 %476, %v447
  %v478 = vpop.permute.xlu0 %477
  %481 = vset.pattern.permute.xlu0 0
  %482 = vperm.xlu0 %481, %v448
  %v483 = vpop.permute.xlu0 %482
  %486 = vset.pattern.permute.xlu0 0
  %487 = vperm.xlu0 %486, %v449
  %v488 = vpop.permute.xlu0 %487
  %491 = vset.pattern.permute.xlu0 0
  %492 = vperm.xlu0 %491, %v450
  %v493 = vpop.permute.xlu0 %492
  %496 = vset.pattern.permute.xlu0 0
  %497 = vperm.xlu0 %496, %v451
  %v498 = vpop.permute.xlu0 %497
  %501 = vset.pattern.permute.xlu0 0
  %502 = vperm.xlu0 %501, %v452
  %v503 = vpop.permute.xlu0 %502
  %506 = vset.pattern.permute.xlu0 0
  %507 = vperm.xlu0 %506, %v453
  %v508 = vpop.permute.xlu0 %507
  %511 = vset.pattern.permute.xlu0 0
  %512 = vperm.xlu0 %511, %v454
  %v513 = vpop.permute.xlu0 %512
  %516 = vset.pattern.permute.xlu0 0
  %517 = vperm.xlu0 %516, %v455
  %v518 = vpop.permute.xlu0 %517
  %521 = vset.pattern.permute.xlu0 0
  %522 = vperm.xlu0 %521, %v456
  %v523 = vpop.permute.xlu0 %522
  %526 = vset.pattern.permute.xlu0 0
  %527 = vperm.xlu0 %526, %v457
  %v528 = vpop.permute.xlu0 %527
  %531 = vset.pattern.permute.xlu0 0
  %532 = vperm.xlu0 %531, %v458
  %v533 = vpop.permute.xlu0 %532
  %536 = vset.pattern.permute.xlu0 0
  %537 = vperm.xlu0 %536, %v459
  %v538 = vpop.permute.xlu0 %537
  %v540 = vadd.f32 %v428, %v463
  %v541 = vadd.f32 %v429, %v468
  %v542 = vadd.f32 %v430, %v473
  %v543 = vadd.f32 %v431, %v478
  %v544 = vadd.f32 %v432, %v483
  %v545 = vadd.f32 %v433, %v488
  %v546 = vadd.f32 %v434, %v493
  %v547 = vadd.f32 %v435, %v498
  %v548 = vadd.f32 %v436, %v503
  %v549 = vadd.f32 %v437, %v508
  %v550 = vadd.f32 %v438, %v513
  %v551 = vadd.f32 %v439, %v518
  %v552 = vadd.f32 %v440, %v523
  %v553 = vadd.f32 %v441, %v528
  %v554 = vadd.f32 %v442, %v533
  %v555 = vadd.f32 %v443, %v538
  %v556 = vmax.f32 %v540, 0.0
  %v557 = vmax.f32 %v541, 0.0
  %v558 = vmax.f32 %v542, 0.0
  %v559 = vmax.f32 %v543, 0.0
  %v560 = vmax.f32 %v544, 0.0
  %v561 = vmax.f32 %v545, 0.0
  %v562 = vmax.f32 %v546, 0.0
  %v563 = vmax.f32 %v547, 0.0
  %v564 = vmax.f32 %v548, 0.0
  %v565 = vmax.f32 %v549, 0.0
  %v566 = vmax.f32 %v550, 0.0
  %v567 = vmax.f32 %v551, 0.0
  %v568 = vmax.f32 %v552, 0.0
  %v569 = vmax.f32 %v553, 0.0
  %v570 = vmax.f32 %v554, 0.0
  %v571 = vmax.f32 %v555, 0.0
  %v572 = vld [vmem:[%s3] sm:$0xf]
  %v573 = vld [vmem:[%s3 + $0x4] sm:$0xf]
  %v574 = vld [vmem:[%s3 + $0x8] sm:$0xf]
  %v575 = vld [vmem:[%s3 + $0xc] sm:$0xf]
  %v576 = vld [vmem:[%s3 + $0x10] sm:$0xf]
  %v577 = vld [vmem:[%s3 + $0x14] sm:$0xf]
  %v578 = vld [vmem:[%s3 + $0x18] sm:$0xf]
  %v579 = vld [vmem:[%s3 + $0x1c] sm:$0xf]
  %v580 = vld [vmem:[%s3 + $0x20] sm:$0xf]
  %v581 = vld [vmem:[%s3 + $0x24] sm:$0xf]
  %v582 = vld [vmem:[%s3 + $0x28] sm:$0xf]
  %v583 = vld [vmem:[%s3 + $0x2c] sm:$0xf]
  %v584 = vld [vmem:[%s3 + $0x30] sm:$0xf]
  %v585 = vld [vmem:[%s3 + $0x34] sm:$0xf]
  %v586 = vld [vmem:[%s3 + $0x38] sm:$0xf]
  %v587 = vld [vmem:[%s3 + $0x3c] sm:$0xf]
  %v588 = vpack.c.bf16 %v557, %v556
  %v589 = vpack.c.bf16 %v559, %v558
  %v590 = vpack.c.bf16 %v561, %v560
  %v591 = vpack.c.bf16 %v563, %v562
  %v592 = vpack.c.bf16 %v565, %v564
  %v593 = vpack.c.bf16 %v567, %v566
  %v594 = vpack.c.bf16 %v569, %v568
  %v595 = vpack.c.bf16 %v571, %v570
  %v596 = vld [vmem:[%s4] sm:$0xff]
  %v597 = vld [vmem:[%s4 + $0x8] sm:$0xff]
  %v598 = vld [vmem:[%s4 + $0x10] sm:$0xff]
  %v599 = vld [vmem:[%s4 + $0x18] sm:$0xff]
  %v600 = vld [vmem:[%s4 + $0x20] sm:$0xff]
  %v601 = vld [vmem:[%s4 + $0x28] sm:$0xff]
  %v602 = vld [vmem:[%s4 + $0x30] sm:$0xff]
  %v603 = vld [vmem:[%s4 + $0x38] sm:$0xff]
  %v604 = vld [vmem:[%s4 + $0x40] sm:$0xff]
  %v605 = vld [vmem:[%s4 + $0x48] sm:$0xff]
  %v606 = vld [vmem:[%s4 + $0x50] sm:$0xff]
  %v607 = vld [vmem:[%s4 + $0x58] sm:$0xff]
  %v608 = vld [vmem:[%s4 + $0x60] sm:$0xff]
  %v609 = vld [vmem:[%s4 + $0x68] sm:$0xff]
  %v610 = vld [vmem:[%s4 + $0x70] sm:$0xff]
  %v611 = vld [vmem:[%s4 + $0x78] sm:$0xff]
  %613 = vset.pattern.permute.xlu0 0
  %614 = vperm.xlu0 %613, %v596
  %v615 = vpop.permute.xlu0 %614
  %618 = vset.pattern.permute.xlu0 0
  %619 = vperm.xlu0 %618, %v597
  %v620 = vpop.permute.xlu0 %619
  %623 = vset.pattern.permute.xlu0 0
  %624 = vperm.xlu0 %623, %v598
  %v625 = vpop.permute.xlu0 %624
  %628 = vset.pattern.permute.xlu0 0
  %629 = vperm.xlu0 %628, %v599
  %v630 = vpop.permute.xlu0 %629
  %633 = vset.pattern.permute.xlu0 0
  %634 = vperm.xlu0 %633, %v600
  %v635 = vpop.permute.xlu0 %634
  %638 = vset.pattern.permute.xlu0 0
  %639 = vperm.xlu0 %638, %v601
  %v640 = vpop.permute.xlu0 %639
  %643 = vset.pattern.permute.xlu0 0
  %644 = vperm.xlu0 %643, %v602
  %v645 = vpop.permute.xlu0 %644
  %648 = vset.pattern.permute.xlu0 0
  %649 = vperm.xlu0 %648, %v603
  %v650 = vpop.permute.xlu0 %649
  %653 = vset.pattern.permute.xlu0 0
  %654 = vperm.xlu0 %653, %v604
  %v655 = vpop.permute.xlu0 %654
  %658 = vset.pattern.permute.xlu0 0
  %659 = vperm.xlu0 %658, %v605
  %v660 = vpop.permute.xlu0 %659
  %663 = vset.pattern.permute.xlu0 0
  %664 = vperm.xlu0 %663, %v606
  %v665 = vpop.permute.xlu0 %664
  %668 = vset.pattern.permute.xlu0 0
  %669 = vperm.xlu0 %668, %v607
  %v670 = vpop.permute.xlu0 %669
  %673 = vset.pattern.permute.xlu0 0
  %674 = vperm.xlu0 %673, %v608
  %v675 = vpop.permute.xlu0 %674
  %678 = vset.pattern.permute.xlu0 0
  %679 = vperm.xlu0 %678, %v609
  %v680 = vpop.permute.xlu0 %679
  %683 = vset.pattern.permute.xlu0 0
  %684 = vperm.xlu0 %683, %v610
  %v685 = vpop.permute.xlu0 %684
  %688 = vset.pattern.permute.xlu0 0
  %689 = vperm.xlu0 %688, %v611
  %v690 = vpop.permute.xlu0 %689
  %v708 = vunpack.c.l.b16 %v572
  %v709 = vunpack.c.l.b16 %v573
  %v710 = vunpack.c.l.b16 %v574
  %v711 = vunpack.c.l.b16 %v575
  %v712 = vunpack.c.l.b16 %v576
  %v713 = vunpack.c.l.b16 %v577
  %v714 = vunpack.c.l.b16 %v578
  %v715 = vunpack.c.l.b16 %v579
  %v716 = vunpack.c.l.b16 %v580
  %v717 = vunpack.c.l.b16 %v581
  %v718 = vunpack.c.l.b16 %v582
  %v719 = vunpack.c.l.b16 %v583
  %v720 = vunpack.c.l.b16 %v584
  %v721 = vunpack.c.l.b16 %v585
  %v722 = vunpack.c.l.b16 %v586
  %v723 = vunpack.c.l.b16 %v587
  %v724 = vpack.c.b16 %v709, %v708
  %v725 = vpack.c.b16 %v711, %v710
  %v726 = vpack.c.b16 %v713, %v712
  %v727 = vpack.c.b16 %v715, %v714
  %v728 = vpack.c.b16 %v717, %v716
  %v729 = vpack.c.b16 %v719, %v718
  %v730 = vpack.c.b16 %v721, %v720
  %v731 = vpack.c.b16 %v723, %v722
  %740 = vmatprep.subr.bf16.mxu0 0
  %741 = vmatpush1.bf16.msra.mxu0 %v595
  %742 = vmatprep.subr.bf16.mxu0 0
  %743 = vmatpush1.bf16.msra.mxu0 %v594
  %744 = vmatprep.subr.bf16.mxu0 0
  %745 = vmatpush1.bf16.msra.mxu0 %v593
  %746 = vmatprep.subr.bf16.mxu0 0
  %747 = vmatpush1.bf16.msra.mxu0 %v592
  %748 = vmatprep.subr.bf16.mxu0 0
  %749 = vmatpush1.bf16.msra.mxu0 %v591
  %750 = vmatprep.subr.bf16.mxu0 0
  %751 = vmatpush1.bf16.msra.mxu0 %v590
  %752 = vmatprep.subr.bf16.mxu0 0
  %753 = vmatpush1.bf16.msra.mxu0 %v589
  %754 = vmatprep.subr.bf16.mxu0 0
  %755 = vmatpush1.bf16.msra.mxu0 %v588
  %756 = vmatprep.subr.bf16.mxu0 0
  %757 = vmatpush2.bf16.msra.mxu0 0
  %758 = vmatprep.subr.bf16.mxu0 0
  %759 = vmatpush2.bf16.msra.mxu0 0
  %760 = vmatprep.subr.bf16.mxu0 0
  %761 = vmatpush2.bf16.msra.mxu0 0
  %762 = vmatprep.subr.bf16.mxu0 0
  %763 = vmatpush2.bf16.msra.mxu0 0
  %764 = vmatprep.subr.bf16.mxu0 0
  %765 = vmatpush2.bf16.msra.mxu0 0
  %766 = vmatprep.subr.bf16.mxu0 0
  %767 = vmatpush2.bf16.msra.mxu0 0
  %768 = vmatprep.subr.bf16.mxu0 0
  %769 = vmatpush2.bf16.msra.mxu0 0
  %770 = vmatprep.subr.bf16.mxu0 0
  %771 = vmatpush2.bf16.msra.mxu0 0
  %772 = vmatprep.mubr.bf16.mxu0 0
  %773 = vmatmul.mubr.bf16.gmra.mxu0 %v724
  %v774 = vpop.f32.mrf.mxu0
  %v775 = vadd.f32 %v615, %v774
  %v776 = vpop.f32.mrf.mxu0
  %v777 = vpop.f32.mrf.mxu0
  %v778 = vadd.f32 %v620, %v777
  %v779 = vpop.f32.mrf.mxu0
  %780 = vmatprep.mubr.bf16.mxu0 0
  %781 = vmatmul.mubr.bf16.gmra.mxu0 %v725
  %v782 = vpop.f32.mrf.mxu0
  %v783 = vadd.f32 %v625, %v782
  %v784 = vpop.f32.mrf.mxu0
  %v785 = vpop.f32.mrf.mxu0
  %v786 = vadd.f32 %v630, %v785
  %v787 = vpop.f32.mrf.mxu0
  %788 = vmatprep.mubr.bf16.mxu0 0
  %789 = vmatmul.mubr.bf16.gmra.mxu0 %v726
  %v790 = vpop.f32.mrf.mxu0
  %v791 = vadd.f32 %v635, %v790
  %v792 = vpop.f32.mrf.mxu0
  %v793 = vpop.f32.mrf.mxu0
  %v794 = vadd.f32 %v640, %v793
  %v795 = vpop.f32.mrf.mxu0
  %796 = vmatprep.mubr.bf16.mxu0 0
  %797 = vmatmul.mubr.bf16.gmra.mxu0 %v727
  %v798 = vpop.f32.mrf.mxu0
  %v799 = vadd.f32 %v645, %v798
  %v800 = vpop.f32.mrf.mxu0
  %v801 = vpop.f32.mrf.mxu0
  %v802 = vadd.f32 %v650, %v801
  %v803 = vpop.f32.mrf.mxu0
  %804 = vmatprep.mubr.bf16.mxu0 0
  %805 = vmatmul.mubr.bf16.gmra.mxu0 %v728
  %v806 = vpop.f32.mrf.mxu0
  %v807 = vadd.f32 %v655, %v806
  %v808 = vpop.f32.mrf.mxu0
  %v809 = vpop.f32.mrf.mxu0
  %v810 = vadd.f32 %v660, %v809
  %v811 = vpop.f32.mrf.mxu0
  %812 = vmatprep.mubr.bf16.mxu0 0
  %813 = vmatmul.mubr.bf16.gmra.mxu0 %v729
  %v814 = vpop.f32.mrf.mxu0
  %v815 = vadd.f32 %v665, %v814
  %v816 = vpop.f32.mrf.mxu0
  %v817 = vpop.f32.mrf.mxu0
  %v818 = vadd.f32 %v670, %v817
  %v819 = vpop.f32.mrf.mxu0
  %820 = vmatprep.mubr.bf16.mxu0 0
  %821 = vmatmul.mubr.bf16.gmra.mxu0 %v730
  %v822 = vpop.f32.mrf.mxu0
  %v823 = vadd.f32 %v675, %v822
  %v824 = vpop.f32.mrf.mxu0
  %v825 = vpop.f32.mrf.mxu0
  %v826 = vadd.f32 %v680, %v825
  %v827 = vpop.f32.mrf.mxu0
  %828 = vmatprep.mubr.bf16.mxu0 0
  %829 = vmatmul.mubr.bf16.gmra.mxu0 %v731
  %v830 = vpop.f32.mrf.mxu0
  %v831 = vadd.f32 %v685, %v830
  %v832 = vpop.f32.mrf.mxu0
  %v833 = vpop.f32.mrf.mxu0
  %v834 = vadd.f32 %v690, %v833
  %v835 = vpop.f32.mrf.mxu0
  %836 = vdwg.mxu0
  %v837 = vmax.f32 %v775, 0.0
  %v838 = vmax.f32 %v778, 0.0
  %v839 = vmax.f32 %v783, 0.0
  %v840 = vmax.f32 %v786, 0.0
  %v841 = vmax.f32 %v791, 0.0
  %v842 = vmax.f32 %v794, 0.0
  %v843 = vmax.f32 %v799, 0.0
  %v844 = vmax.f32 %v802, 0.0
  %v845 = vmax.f32 %v807, 0.0
  %v846 = vmax.f32 %v810, 0.0
  %v847 = vmax.f32 %v815, 0.0
  %v848 = vmax.f32 %v818, 0.0
  %v849 = vmax.f32 %v823, 0.0
  %v850 = vmax.f32 %v826, 0.0
  %v851 = vmax.f32 %v831, 0.0
  %v852 = vmax.f32 %v834, 0.0
  %v853 = vld [vmem:[%s5] sm:$0x1]
  %v854 = vpack.c.bf16 %v838, %v837
  %v855 = vpack.c.bf16 %v840, %v839
  %v856 = vpack.c.bf16 %v842, %v841
  %v857 = vpack.c.bf16 %v844, %v843
  %v858 = vpack.c.bf16 %v846, %v845
  %v859 = vpack.c.bf16 %v848, %v847
  %v860 = vpack.c.bf16 %v850, %v849
  %v861 = vpack.c.bf16 %v852, %v851
  %v862 = vld [vmem:[%s6] sm:$0x3]
  %864 = vset.pattern.permute.xlu0 0
  %865 = vperm.xlu0 %864, %v862
  %v866 = vpop.permute.xlu0 %865
  %868 = vmatprep.subr.bf16.mxu0 0
  %869 = vmatpush1.bf16.msra.mxu0 %v861
  %870 = vmatprep.subr.bf16.mxu0 0
  %871 = vmatpush1.bf16.msra.mxu0 %v860
  %872 = vmatprep.subr.bf16.mxu0 0
  %873 = vmatpush1.bf16.msra.mxu0 %v859
  %874 = vmatprep.subr.bf16.mxu0 0
  %875 = vmatpush1.bf16.msra.mxu0 %v858
  %876 = vmatprep.subr.bf16.mxu0 0
  %877 = vmatpush1.bf16.msra.mxu0 %v857
  %878 = vmatprep.subr.bf16.mxu0 0
  %879 = vmatpush1.bf16.msra.mxu0 %v856
  %880 = vmatprep.subr.bf16.mxu0 0
  %881 = vmatpush1.bf16.msra.mxu0 %v855
  %882 = vmatprep.subr.bf16.mxu0 0
  %883 = vmatpush1.bf16.msra.mxu0 %v854
  %884 = vmatprep.subr.bf16.mxu0 0
  %885 = vmatpush2.bf16.msra.mxu0 0
  %886 = vmatprep.subr.bf16.mxu0 0
  %887 = vmatpush2.bf16.msra.mxu0 0
  %888 = vmatprep.subr.bf16.mxu0 0
  %889 = vmatpush2.bf16.msra.mxu0 0
  %890 = vmatprep.subr.bf16.mxu0 0
  %891 = vmatpush2.bf16.msra.mxu0 0
  %892 = vmatprep.subr.bf16.mxu0 0
  %893 = vmatpush2.bf16.msra.mxu0 0
  %894 = vmatprep.subr.bf16.mxu0 0
  %895 = vmatpush2.bf16.msra.mxu0 0
  %896 = vmatprep.subr.bf16.mxu0 0
  %897 = vmatpush2.bf16.msra.mxu0 0
  %898 = vmatprep.subr.bf16.mxu0 0
  %899 = vmatpush2.bf16.msra.mxu0 0
  %900 = vmatprep.mubr.bf16.mxu0 0
  %901 = vmatmul.mubr.bf16.gmra.mxu0 %v853
  %v902 = vpop.f32.mrf.mxu0
  %v903 = vadd.f32 %v866, %v902
  %v904 = vpop.f32.mrf.mxu0
  %v905 = vpop.f32.mrf.mxu0
  %v906 = vpop.f32.mrf.mxu0
  %907 = vdwg.mxu0
  %v908 = vlaneseq
  %v909 = vshrl.u32 %v908, 7
  %vm910 = vcmp.eq.s32.totalorder %v909, 1
  %v911 = vmax.f32 %v903, 0.0
  %vm912 = vcmp.ne.f32.partialorder %v903, %v903
  %v913 = vadd.f32 %v903, 0.0
  %v914 = vand.u32 2147483647, %v903
  %v915 = vsub.f32 0.0, %v914
  %v916 = vmul.f32 %v915, 1.442695
  %v917 = vpow.pop %v916
  %v918 = vadd.f32 %v917, 1.0
  %v919 = vlog2.pop %v918
  %v920 = vmul.f32 %v919, 0.6931472
  %v921 = vmul.f32 -0.5, %v917
  %v922 = vadd.f32 %v921, 1.0
  %v923 = vmul.f32 %v922, %v917
  %v924 = vand.u32 2147483647, %v917
  %vm925 = vcmp.lt.f32.partialorder %v924, 0.0004427343
  %v926 = vsel %vm925, %v923, %v920
  %v927 = vadd.f32 %v911, %v926
  %v928 = vsel %vm912, %v913, %v927
  %v929 = vsel %vm910, %v928, %v903
  %930 = vst [vmem:[%s7] sm:$0x3] %v929
  // Predicated region
  $region30: #{policy_net_forward.1} parent=0 // pred_check
    _
  $region31: #{policy_net_forward.1} parent=0 // pred_check_branch
    %932 = sbr.rel (0) target = $region33
  $region32: #{policy_net_forward.1} parent=0 // pred_region
    _
  $region33: #{policy_net_forward.1} parent=0 // pred_fallthru
    _
  // Predicated region
  $region34: #{policy_net_forward.1} parent=0 // pred_check
    _
  $region35: #{policy_net_forward.1} parent=0 // pred_check_branch
    %934 = sbr.rel (0) target = $region37
  $region36: #{policy_net_forward.1} parent=0 // pred_region
    _
  $region37: #{policy_net_forward.1} parent=0 // pred_fallthru
    _

</llo_original>
